<compile_context>
chip_gen: v7x
topology: tpu7x:2x2x1
jax: 0.10.0
libtpu: 0.0.40
codegen_flags: <defaults>
</compile_context>

<pallas_src>
from itertools import product

import jax
import jax.numpy as jnp
from jax import lax
from jax.experimental import pallas as pl
from jax.experimental.pallas import tpu as pltpu


# ----------------------------------------------------------------------------
# Helpers mirroring the PyTorch reference (int2tuple / elementwise_max /
# get_weight).  get_weight() is not defined in the provided source; the usual
# DARTS-style softmax(alpha / temp) is assumed (alpha == 0 -> uniform).
# ----------------------------------------------------------------------------
def int2tuple(v, length):
    if isinstance(v, (tuple, list)):
        return tuple(v)
    return (v,) * length


def elementwise_max(lists):
    return tuple(max(vals) for vals in zip(*lists))


def get_weight(temp, alpha):
    return jax.nn.softmax(alpha / temp)


# ----------------------------------------------------------------------------
# Pallas kernel: one (Cout, K) @ (K, m_tile) MXU matmul per grid step.
# ----------------------------------------------------------------------------
def _conv_mm_kernel(w_ref, x_ref, o_ref):
    # w_ref: (Cout, K)   mixed weights, lane axis = K (>=128 wide)
    # x_ref: (K, m_tile) im2col block,  lane axis = m_tile (=128, dense)
    # o_ref: (Cout, m_tile) lane-dense output tile
    o_ref[...] = jnp.dot(
        w_ref[...], x_ref[...], preferred_element_type=jnp.float32
    ).astype(o_ref.dtype)


def _pick_m_tile(m_total):
    """Pick a lane-dense (multiple-of-128) M tile that leaves >=2 grid steps,
    falling back to a single full-M tile when no such divisor exists."""
    for t in (512, 256, 128):
        if m_total % t == 0 and m_total // t >= 2:
            return t
    for t in (512, 256, 128):
        if m_total % t == 0:
            return t
    return m_total


def mixed_conv2d(x_nchw, coef, cat_oihw, KH, KW):
    """conv2d(x, sum_i coef[i] * padded_candidate_weight[i], padding=(K-1)//2)."""
    N, Cin, H, W = x_nchw.shape
    num_branches, Cout, _, kh_, kw_ = cat_oihw.shape
    assert (kh_, kw_) == (KH, KW)

    ph, pw = (KH - 1) // 2, (KW - 1) // 2                    # F.conv2d padding
    Hp, Wp = H + 2 * ph, W + 2 * pw
    Ho, Wo = Hp - KH + 1, Wp - KW + 1
    K = KH * KW * Cin
    M = Ho * Wo

    # 1) Mix candidate kernels with the architecture coefficients (wrapper side,
    #    single contraction -> no per-branch broadcast-multiplies in the kernel).
    w_mixed = jnp.einsum('b,boihw->oihw', coef, cat_oihw)            # (O, I, KH, KW)
    wT = jnp.transpose(w_mixed, (0, 2, 3, 1)).reshape(Cout, K)       # k = (kh, kw, ci)

    # 2) Transposed im2col: lhsT[n, (kh*KW+kw)*Cin+ci, ho*Wo+wo].
    x_pad = jnp.pad(x_nchw, ((0, 0), (0, 0), (ph, ph), (pw, pw)))
    patches = [x_pad[:, :, kh:kh + Ho, kw:kw + Wo]                   # (N, Cin, Ho, Wo)
               for kh in range(KH) for kw in range(KW)]
    lhsT = jnp.stack(patches, axis=1).reshape(N, K, M)               # (N, K, M)

    m_tile = _pick_m_tile(M)
    assert M % m_tile == 0
    grid = (N, M // m_tile)

    cost = pl.CostEstimate(
        flops=2 * N * M * K * Cout,
        transcendentals=0,
        bytes_accessed=4 * (lhsT.size + wT.size + N * Cout * M))

    out_flat = pl.pallas_call(
        _conv_mm_kernel,
        out_shape=jax.ShapeDtypeStruct((N, Cout, M), jnp.float32),
        grid=grid,
        in_specs=[
            # mixed weights: resident, same block for every grid step
            pl.BlockSpec((Cout, K), lambda n, m: (0, 0)),
            # im2col block: lane-dense (K, m_tile) slab per (image, M-tile)
            pl.BlockSpec((None, K, m_tile), lambda n, m: (n, 0, m)),
        ],
        out_specs=pl.BlockSpec((None, Cout, m_tile), lambda n, m: (n, 0, m)),
        compiler_params=pltpu.CompilerParams(
            dimension_semantics=("parallel", "parallel")),
        cost_estimate=cost,
    )(wT, lhsT)

    return out_flat.reshape(N, Cout, Ho, Wo)                         # NCHW, no transpose


# ----------------------------------------------------------------------------
# Parameter setup (deterministic), mirroring MixedWeights.__init__ / forward prep
# ----------------------------------------------------------------------------
def init_mixed_weights(key, in_channels, out_channels, kernel_sizes, dilations):
    dims = len(kernel_sizes[0])
    kd = list(product(kernel_sizes, [int2tuple(d, dims) for d in dilations]))
    keys = jax.random.split(key, len(kd))
    weights = [
        jax.random.normal(k, (out_channels, in_channels) + tuple(ks), jnp.float32)
        for (ks, _), k in zip(kd, keys)
    ]
    alpha = jnp.zeros((len(kd),), jnp.float32)
    shape_sp = elementwise_max(
        [[d * (k - 1) + 1 for k, d in zip(ks, ds)] for ks, ds in kd])
    return kd, weights, alpha, shape_sp


def build_cat(kd, weights, shape_sp):
    """Dilate (zero-insertion, equivalent to the torch.kron trick) and F.pad every
    candidate kernel to the common spatial footprint.  Returns [num, O, I, KH, KW]."""
    outs = []
    for (ks, ds), w in zip(kd, weights):
        d = ds[0]          # the reference loop only inspects dim 0, then breaks
        if d > 1:
            O, I, k0, k1 = w.shape
            dil = jnp.zeros((O, I, d * (k0 - 1) + 1, d * (k1 - 1) + 1), w.dtype)
            w = dil.at[:, :, ::d, ::d].set(w)
        pads = [((s - dd * (kk - 1) - 1) // 2, (s - dd * (kk - 1)) // 2)
                for kk, dd, s in zip(ks, ds, shape_sp)]
        # F.pad applies the first (left, right) pair to the LAST dim
        w = jnp.pad(w, ((0, 0), (0, 0), pads[1], pads[0]))
        outs.append(w)
    return jnp.stack(outs, axis=0)


if __name__ == "__main__":
    key = jax.random.PRNGKey(0)
    k_x, k_w = jax.random.split(key)

    # MixedWeights(in_channels=4, out_channels=8,
    #              kernel_sizes=[(3, 3), (5, 5)], dilations=[1, 2])
    N, Cin, H, W = 2, 4, 16, 16
    Cout = 8
    kernel_sizes = [(3, 3), (5, 5)]
    dilations = [1, 2]
    temp = 1.0

    kd, weights, alpha, shape_sp = init_mixed_weights(
        k_w, Cin, Cout, kernel_sizes, dilations)
    KH, KW = shape_sp                                        # (9, 9)

    x = jax.random.normal(k_x, (N, Cin, H, W), jnp.float32)  # NCHW like PyTorch

    coef = get_weight(temp, alpha)                           # uniform (alpha == 0)
    cat_oihw = build_cat(kd, weights, shape_sp)              # (num, O, I, KH, KW)

    run = jax.jit(mixed_conv2d, static_argnums=(3, 4))
    y = run(x, coef, cat_oihw, KH, KW)
    y = jax.block_until_ready(y)

    # Pure-JAX reference for the full forward (weight mixing + conv2d).
    w_mixed = jnp.einsum('b,boihw->oihw', coef, cat_oihw)
    ph, pw = (KH - 1) // 2, (KW - 1) // 2
    y_ref = lax.conv_general_dilated(
        x, w_mixed, window_strides=(1, 1), padding=[(ph, ph), (pw, pw)],
        dimension_numbers=('NCHW', 'OIHW', 'NCHW'))

    assert y.shape == y_ref.shape == (N, Cout, H, W), (y.shape, y_ref.shape)
    # Slightly relaxed vs a bit-exact check: the MXU contracts all KH*KW*Cin taps
    # in one pass, so the f32 accumulation order differs from lax.conv's.
    assert jnp.allclose(y, y_ref, rtol=5e-4, atol=5e-4), \
        float(jnp.max(jnp.abs(y - y_ref)))
    print("KERNEL_OK")
</pallas_src>

<mosaic_0001>
module attributes {stable_mosaic.version = 11 : i64} {
  func.func @_conv_mm_kernel(%arg0: i32, %arg1: i32, %arg2: memref<8x324xf32, #tpu.memory_space<vmem>>, %arg3: memref<1x324x128xf32, #tpu.memory_space<vmem>>, %arg4: memref<1x8x128xf32, #tpu.memory_space<vmem>>) attributes {dimension_semantics = [#tpu.dimension_semantics<parallel>, #tpu.dimension_semantics<parallel>], iteration_bounds = array<i64: 2, 2>, scalar_prefetch = 0 : i64, scratch_operands = 0 : i64, tpu.core_type = #tpu.core_type<tc>, window_params = [{pipeline_mode = #tpu.pipeline_mode<synchronous>, transform_indices = @transform_0, window_bounds = array<i64: 8, 324>}, {transform_indices = @transform_1, window_bounds = array<i64: 1, 324, 128>}, {transform_indices = @transform_2, window_bounds = array<i64: 1, 8, 128>}]} {
    %c0 = arith.constant 0 : index
    %c0_0 = arith.constant 0 : index
    %0 = vector.load %arg2[%c0, %c0_0] : memref<8x324xf32, #tpu.memory_space<vmem>>, vector<8x324xf32>
    %c0_1 = arith.constant 0 : index
    %c0_2 = arith.constant 0 : index
    %c0_3 = arith.constant 0 : index
    %1 = vector.load %arg3[%c0_1, %c0_2, %c0_3] : memref<1x324x128xf32, #tpu.memory_space<vmem>>, vector<1x324x128xf32>
    %2 = vector.shape_cast %1 : vector<1x324x128xf32> to vector<324x128xf32>
    %cst = arith.constant dense<0.000000e+00> : vector<8x128xf32>
    %3 = tpu.matmul %0, %2, %cst {dimension_numbers = #tpu.dot_dimension_numbers<[1], [0], [0], [1], [0, 0, 1, 1], [], []>} : vector<8x324xf32>, vector<324x128xf32>, vector<8x128xf32> -> vector<8x128xf32>
    %c0_4 = arith.constant 0 : index
    %c0_5 = arith.constant 0 : index
    %c0_6 = arith.constant 0 : index
    %4 = vector.load %arg4[%c0_4, %c0_5, %c0_6] : memref<1x8x128xf32, #tpu.memory_space<vmem>>, vector<1x8x128xf32>
    %5 = vector.shape_cast %4 : vector<1x8x128xf32> to vector<8x128xf32>
    %6 = vector.shape_cast %3 : vector<8x128xf32> to vector<1x8x128xf32>
    tpu.vector_store %arg4[%c0_4, %c0_5, %c0_6], %6 {strides = array<i32>} : memref<1x8x128xf32, #tpu.memory_space<vmem>>, vector<1x8x128xf32>,
    return
  }
  func.func @transform_0(%arg0: i32, %arg1: i32) -> (i32, i32) {
    %c0_i32 = arith.constant 0 : i32
    %c0_i32_0 = arith.constant 0 : i32
    %c0_i32_1 = arith.constant 0 : i32
    return %c0_i32, %c0_i32_0 : i32, i32
  }
  func.func @transform_1(%arg0: i32, %arg1: i32) -> (i32, i32, i32) {
    %c0_i32 = arith.constant 0 : i32
    %c0_i32_0 = arith.constant 0 : i32
    return %arg0, %c0_i32, %arg1 : i32, i32, i32
  }
  func.func @transform_2(%arg0: i32, %arg1: i32) -> (i32, i32, i32) {
    %c0_i32 = arith.constant 0 : i32
    %c0_i32_0 = arith.constant 0 : i32
    return %arg0, %c0_i32, %arg1 : i32, i32, i32
  }
}

</mosaic_0001>

<llo_original>
// kernel: mixed_conv2d.1
$region0: #{mixed_conv2d.1}
  #allocation0 [shape = 'u32[]', space=smem, size = 0x4, offset = 0x4, fixed_abs, tag = 'smem constant byte address 0x4 - core index']
  #allocation1 [shape = 'u32[144,128]{1,0:T(1,128)}', space=vmem, size = 0x12000, scoped, tag = 'internal scratch']
  %s0 = inlined_call_operand.vmem [shape: f32[8,324], index: 0, kind: input, shape index: {}]
  %s1 = inlined_call_operand.vmem [shape: f32[2,324,256], index: 1, kind: input, shape index: {}]
  %s2 = inlined_call_operand.vmem [shape: f32[2,8,256], index: 2, kind: output, shape index: {}]
  %s3 = sld [smem:[#allocation0]]
  $region79: #{mixed_conv2d.1} parent=0
    _
  %s5 = ssub.s32 1, %s3
  %s6 = scalar_select 0, %s5, %s3
  $region1: #{mixed_conv2d.1} parent=0
    #allocation2 [shape = 'u8[335872]{0}', space=vmem, size = 0x52000, scoped, tag = 'input window, operand 1']
    loop: start=0, step=1, limit=6
    $region2: #{mixed_conv2d.1} parent=1 // loop_pre_header
      _
    $region3: #{mixed_conv2d.1} parent=1 // loop_header
      %s8 = sphi 0, %s12
      %p9 = scmp.ge.s32.totalorder %s8, 6
      %s15 = sphi 0, %s27
      %s16 = sphi 0, %s23
      %s17 = sphi 0, %s15
      %s18 = sphi 0, %s16
      %s19 = sphi 0, %s17
      %s20 = sphi 0, %s18
      %s28 = sphi 0, %s28
      %s30 = sphi 0, %s28
      %s31 = sphi 0, %s30
      %s45 = sphi 0, %s31
      %s53 = sphi 0, %s55
      %s56 = sphi 0, %s53
      %s57 = sphi 0, %s56
      %s73 = sphi 0, %s57
      %s81 = sphi 0, %s83
      %s84 = sphi 0, %s81
      %s85 = sphi 0, %s84
      %s101 = sphi 0, %s85
    $region4: #{mixed_conv2d.1} parent=1 // loop_header_branch
      %11 = sbr.rel (%p9) target = $region8
    $region5: #{mixed_conv2d.1} parent=1 // loop_body
      %s13 = ssub.s32 %s8, 1
      %s14 = ssub.s32 %s8, 2
      %s21 = sadd.s32 1, %s16
      %p22 = scmp.ge.s32.totalorder %s21, 2
      %s23 = scalar_select %p22, 0, %s21
      %s24 = sadd.s32 1, %s15
      %s25 = scalar_select %p22, %s24, %s15
      %p26 = scmp.ge.s32.totalorder %s25, 2
      %s27 = scalar_select %p26, 0, %s25
      %s29 = sadd.s32 %s28, 1
      %p32 = scmp.eq.s32.totalorder %s8, 3
      %p33 = scmp.ne.s32.totalorder %s28, %s30
      %p34 = scmp.eq.s32.totalorder %s8, 0
      %p35 = por %p33, %p34
      %p36 = scmp.ne.s32.totalorder %s28, %s30
      %p37 = scmp.eq.s32.totalorder %s13, 3
      %p38 = por %p36, %p37
      %p39 = scmp.ne.s32.totalorder %s30, %s31
      %p40 = scmp.eq.s32.totalorder %s13, 0
      %p41 = por %p39, %p40
      %p42 = scmp.ne.s32.totalorder %s30, %s31
      %p43 = scmp.eq.s32.totalorder %s14, 3
      %p44 = por %p42, %p43
      %p46 = scmp.ne.s32.totalorder %s31, %s45
      %p47 = scmp.eq.s32.totalorder %s14, 0
      %p48 = por %p46, %p47
      %s49 = ssub.s32 %s15, %s27
      %s50 = ssub.s32 %s16, %s23
      %s51 = sor.u32 %s49, %s50
      %p52 = scmp.eq.s32.totalorder %s51, 0
      %s54 = sadd.s32 %s53, 1
      %s55 = scalar_select %p52, %s53, %s54
      %p58 = pneg %p52
      %p59 = scmp.eq.s32.totalorder %s8, 3
      %p60 = por %p58, %p59
      %p61 = scmp.ne.s32.totalorder %s53, %s56
      %p62 = scmp.eq.s32.totalorder %s8, 0
      %p63 = por %p61, %p62
      %p64 = scmp.ne.s32.totalorder %s53, %s56
      %p65 = scmp.eq.s32.totalorder %s13, 3
      %p66 = por %p64, %p65
      %p67 = scmp.ne.s32.totalorder %s56, %s57
      %p68 = scmp.eq.s32.totalorder %s13, 0
      %p69 = por %p67, %p68
      %p70 = scmp.ne.s32.totalorder %s56, %s57
      %p71 = scmp.eq.s32.totalorder %s14, 3
      %p72 = por %p70, %p71
      %p74 = scmp.ne.s32.totalorder %s57, %s73
      %p75 = scmp.eq.s32.totalorder %s14, 0
      %p76 = por %p74, %p75
      %s77 = ssub.s32 %s15, %s27
      %s78 = ssub.s32 %s16, %s23
      %s79 = sor.u32 %s77, %s78
      %p80 = scmp.eq.s32.totalorder %s79, 0
      %s82 = sadd.s32 %s81, 1
      %s83 = scalar_select %p80, %s81, %s82
      %p86 = pneg %p80
      %p87 = scmp.eq.s32.totalorder %s8, 3
      %p88 = por %p86, %p87
      %p89 = scmp.ne.s32.totalorder %s81, %s84
      %p90 = scmp.eq.s32.totalorder %s8, 0
      %p91 = por %p89, %p90
      %p92 = scmp.ne.s32.totalorder %s81, %s84
      %p93 = scmp.eq.s32.totalorder %s13, 3
      %p94 = por %p92, %p93
      %p95 = scmp.ne.s32.totalorder %s84, %s85
      %p96 = scmp.eq.s32.totalorder %s13, 0
      %p97 = por %p95, %p96
      %p98 = scmp.ne.s32.totalorder %s84, %s85
      %p99 = scmp.eq.s32.totalorder %s14, 3
      %p100 = por %p98, %p99
      %p102 = scmp.ne.s32.totalorder %s85, %s101
      %p103 = scmp.eq.s32.totalorder %s14, 0
      %p104 = por %p102, %p103
      %p105 = scmp.le.s32.totalorder 1, %s8
      %p106 = scmp.lt.s32.totalorder %s8, 5
      %p107 = pnand %p105, %p106
      %p108 = pneg %p107
      // Predicated region
      $region9: #{mixed_conv2d.1} parent=5 // pred_check
        _
      $region10: #{mixed_conv2d.1} parent=5 // pred_check_branch
        %110 = sbr.rel (%p107) target = $region12
      $region11: #{mixed_conv2d.1} parent=5 // pred_region
        %s111 = ssub.s32 %s8, 1
        // Predicated region
        $region13: #{mixed_conv2d.1} parent=11 // pred_check
          %p112 = pneg %p41
        $region14: #{mixed_conv2d.1} parent=11 // pred_check_branch
          %114 = sbr.rel (%p112) target = $region16
        $region15: #{mixed_conv2d.1} parent=11 // pred_region
          _
        $region16: #{mixed_conv2d.1} parent=11 // pred_fallthru
          _
      $region12: #{mixed_conv2d.1} parent=5 // pred_fallthru
        _
      %p115 = scmp.lt.s32.totalorder %s8, 4
      // Predicated region
      $region17: #{mixed_conv2d.1} parent=5 // pred_check
        %p116 = pneg %p115
      $region18: #{mixed_conv2d.1} parent=5 // pred_check_branch
        %118 = sbr.rel (%p116) target = $region20
      $region19: #{mixed_conv2d.1} parent=5 // pred_region
        // Predicated region
        $region21: #{mixed_conv2d.1} parent=19 // pred_check
          %p119 = pneg %p63
        $region22: #{mixed_conv2d.1} parent=19 // pred_check_branch
          %121 = sbr.rel (%p119) target = $region24
        $region23: #{mixed_conv2d.1} parent=19 // pred_region
          %s122 = sand.u32 %s53, 1
          %s123 = sand.u32 %s53, 1
          %s124 = smul.addr %s123, 328
          %s125 = scalar_lea.vmem [#allocation2], %s124
          %s126 = smul.addr %s15, 82
          %s127 = sadd.s32 %s16, %s126
          %s128 = smul.addr %s127, 8
          %s129 = scalar_lea.vmem %s1, %s128
          // Predicated region
          $region25: #{mixed_conv2d.1} parent=23 // pred_check
            _
          $region26: #{mixed_conv2d.1} parent=23 // pred_check_branch
            %131 = sbr.rel (0) target = $region28
          $region27: #{mixed_conv2d.1} parent=23 // pred_region
            // Predicated region
            $region29: #{mixed_conv2d.1} parent=27 // pred_check
              _
            $region30: #{mixed_conv2d.1} parent=27 // pred_check_branch
              %133 = sbr.rel (0) target = $region32
            $region31: #{mixed_conv2d.1} parent=27 // pred_region
              // Predicated region
              $region44: #{mixed_conv2d.1} parent=31 // pred_check
                _
              $region45: #{mixed_conv2d.1} parent=31 // pred_check_branch
                %228 = sbr.rel (0) target = $region47
              $region46: #{mixed_conv2d.1} parent=31 // pred_region
                loop: start=0, step=1, limit=1
                $region48: #{mixed_conv2d.1} parent=46 // loop_pre_header
                  _
                $region49: #{mixed_conv2d.1} parent=46 // loop_header
                  %s230 = sphi 0, %s234
                  %p231 = scmp.ge.s32.totalorder %s230, 1
                  %s235 = sphi %s129, %s129
                  %s236 = sphi %s125, %s125
                $region50: #{mixed_conv2d.1} parent=46 // loop_header_branch
                  %233 = sbr.rel (%p231) target = $region54
                $region51: #{mixed_conv2d.1} parent=46 // loop_body
                  %v237 = vld [vmem:[%s235] sm:$0xff]
                  %238 = vst [vmem:[%s236] sm:$0xff] %v237
                  %v239 = vld [vmem:[%s235 + $0x10] sm:$0xff]
                  %240 = vst [vmem:[%s236 + $0x8] sm:$0xff] %v239
                  %v241 = vld [vmem:[%s235 + $0x20] sm:$0xff]
                  %242 = vst [vmem:[%s236 + $0x10] sm:$0xff] %v241
                  %v243 = vld [vmem:[%s235 + $0x30] sm:$0xff]
                  %244 = vst [vmem:[%s236 + $0x18] sm:$0xff] %v243
                  %v245 = vld [vmem:[%s235 + $0x40] sm:$0xff]
                  %246 = vst [vmem:[%s236 + $0x20] sm:$0xff] %v245
                  %v247 = vld [vmem:[%s235 + $0x50] sm:$0xff]
                  %248 = vst [vmem:[%s236 + $0x28] sm:$0xff] %v247
                  %v249 = vld [vmem:[%s235 + $0x60] sm:$0xff]
                  %250 = vst [vmem:[%s236 + $0x30] sm:$0xff] %v249
                  %v251 = vld [vmem:[%s235 + $0x70] sm:$0xff]
                  %252 = vst [vmem:[%s236 + $0x38] sm:$0xff] %v251
                  %v253 = vld [vmem:[%s235 + $0x80] sm:$0xff]
                  %254 = vst [vmem:[%s236 + $0x40] sm:$0xff] %v253
                  %v255 = vld [vmem:[%s235 + $0x90] sm:$0xff]
                  %256 = vst [vmem:[%s236 + $0x48] sm:$0xff] %v255
                  %v257 = vld [vmem:[%s235 + $0xa0] sm:$0xff]
                  %258 = vst [vmem:[%s236 + $0x50] sm:$0xff] %v257
                  %v259 = vld [vmem:[%s235 + $0xb0] sm:$0xff]
                  %260 = vst [vmem:[%s236 + $0x58] sm:$0xff] %v259
                  %v261 = vld [vmem:[%s235 + $0xc0] sm:$0xff]
                  %262 = vst [vmem:[%s236 + $0x60] sm:$0xff] %v261
                  %v263 = vld [vmem:[%s235 + $0xd0] sm:$0xff]
                  %264 = vst [vmem:[%s236 + $0x68] sm:$0xff] %v263
                  %v265 = vld [vmem:[%s235 + $0xe0] sm:$0xff]
                  %266 = vst [vmem:[%s236 + $0x70] sm:$0xff] %v265
                  %v267 = vld [vmem:[%s235 + $0xf0] sm:$0xff]
                  %268 = vst [vmem:[%s236 + $0x78] sm:$0xff] %v267
                  %v269 = vld [vmem:[%s235 + $0x100] sm:$0xff]
                  %270 = vst [vmem:[%s236 + $0x80] sm:$0xff] %v269
                  %v271 = vld [vmem:[%s235 + $0x110] sm:$0xff]
                  %272 = vst [vmem:[%s236 + $0x88] sm:$0xff] %v271
                  %v273 = vld [vmem:[%s235 + $0x120] sm:$0xff]
                  %274 = vst [vmem:[%s236 + $0x90] sm:$0xff] %v273
                  %v275 = vld [vmem:[%s235 + $0x130] sm:$0xff]
                  %276 = vst [vmem:[%s236 + $0x98] sm:$0xff] %v275
                  %v277 = vld [vmem:[%s235 + $0x140] sm:$0xff]
                  %278 = vst [vmem:[%s236 + $0xa0] sm:$0xff] %v277
                  %v279 = vld [vmem:[%s235 + $0x150] sm:$0xff]
                  %280 = vst [vmem:[%s236 + $0xa8] sm:$0xff] %v279
                  %v281 = vld [vmem:[%s235 + $0x160] sm:$0xff]
                  %282 = vst [vmem:[%s236 + $0xb0] sm:$0xff] %v281
                  %v283 = vld [vmem:[%s235 + $0x170] sm:$0xff]
                  %284 = vst [vmem:[%s236 + $0xb8] sm:$0xff] %v283
                  %v285 = vld [vmem:[%s235 + $0x180] sm:$0xff]
                  %286 = vst [vmem:[%s236 + $0xc0] sm:$0xff] %v285
                  %v287 = vld [vmem:[%s235 + $0x190] sm:$0xff]
                  %288 = vst [vmem:[%s236 + $0xc8] sm:$0xff] %v287
                  %v289 = vld [vmem:[%s235 + $0x1a0] sm:$0xff]
                  %290 = vst [vmem:[%s236 + $0xd0] sm:$0xff] %v289
                  %v291 = vld [vmem:[%s235 + $0x1b0] sm:$0xff]
                  %292 = vst [vmem:[%s236 + $0xd8] sm:$0xff] %v291
                  %v293 = vld [vmem:[%s235 + $0x1c0] sm:$0xff]
                  %294 = vst [vmem:[%s236 + $0xe0] sm:$0xff] %v293
                  %v295 = vld [vmem:[%s235 + $0x1d0] sm:$0xff]
                  %296 = vst [vmem:[%s236 + $0xe8] sm:$0xff] %v295
                  %v297 = vld [vmem:[%s235 + $0x1e0] sm:$0xff]
                  %298 = vst [vmem:[%s236 + $0xf0] sm:$0xff] %v297
                  %v299 = vld [vmem:[%s235 + $0x1f0] sm:$0xff]
                  %300 = vst [vmem:[%s236 + $0xf8] sm:$0xff] %v299
                  %v301 = vld [vmem:[%s235 + $0x200] sm:$0xff]
                  %302 = vst [vmem:[%s236 + $0x100] sm:$0xff] %v301
                  %v303 = vld [vmem:[%s235 + $0x210] sm:$0xff]
                  %304 = vst [vmem:[%s236 + $0x108] sm:$0xff] %v303
                  %v305 = vld [vmem:[%s235 + $0x220] sm:$0xff]
                  %306 = vst [vmem:[%s236 + $0x110] sm:$0xff] %v305
                  %v307 = vld [vmem:[%s235 + $0x230] sm:$0xff]
                  %308 = vst [vmem:[%s236 + $0x118] sm:$0xff] %v307
                  %v309 = vld [vmem:[%s235 + $0x240] sm:$0xff]
                  %310 = vst [vmem:[%s236 + $0x120] sm:$0xff] %v309
                  %v311 = vld [vmem:[%s235 + $0x250] sm:$0xff]
                  %312 = vst [vmem:[%s236 + $0x128] sm:$0xff] %v311
                  %v313 = vld [vmem:[%s235 + $0x260] sm:$0xff]
                  %314 = vst [vmem:[%s236 + $0x130] sm:$0xff] %v313
                  %v315 = vld [vmem:[%s235 + $0x270] sm:$0xff]
                  %316 = vst [vmem:[%s236 + $0x138] sm:$0xff] %v315
                  %v317 = vld [vmem:[%s235 + $0x280] sm:$0xff]
                  %318 = vst [vmem:[%s236 + $0x140] sm:$0xff] %v317
                $region52: #{mixed_conv2d.1} parent=46 // loop_footer
                  %s234 = sadd.s32 1, %s230
                $region53: #{mixed_conv2d.1} parent=46 // loop_footer_branch
                  %229 = sbr.rel target = $region49
                $region54: #{mixed_conv2d.1} parent=46 // loop_exit
                  _
              $region47: #{mixed_conv2d.1} parent=31 // pred_fallthru
                _
              // Predicated region
              $region55: #{mixed_conv2d.1} parent=31 // pred_check
                _
              $region56: #{mixed_conv2d.1} parent=31 // pred_check_branch
                %320 = sbr.rel target = $region58
              $region57: #{mixed_conv2d.1} parent=31 // pred_region
                _
              $region58: #{mixed_conv2d.1} parent=31 // pred_fallthru
                _
            $region32: #{mixed_conv2d.1} parent=27 // pred_fallthru
              _
            // Predicated region
            $region33: #{mixed_conv2d.1} parent=27 // pred_check
              _
            $region34: #{mixed_conv2d.1} parent=27 // pred_check_branch
              %135 = sbr.rel target = $region36
            $region35: #{mixed_conv2d.1} parent=27 // pred_region
              loop: start=0, step=1, limit=1
              $region37: #{mixed_conv2d.1} parent=35 // loop_pre_header
                _
              $region38: #{mixed_conv2d.1} parent=35 // loop_header
                %s138 = sphi 0, %s142
                %p139 = scmp.ge.s32.totalorder %s138, 1
                %s143 = sphi %s129, %s129
                %s144 = sphi %s125, %s125
              $region39: #{mixed_conv2d.1} parent=35 // loop_header_branch
                %141 = sbr.rel (%p139) target = $region43
              $region40: #{mixed_conv2d.1} parent=35 // loop_body
                %v145 = vld [vmem:[%s143] sm:$0xff]
                %146 = vst [vmem:[%s144] sm:$0xff] %v145
                %v147 = vld [vmem:[%s143 + $0x10] sm:$0xff]
                %148 = vst [vmem:[%s144 + $0x8] sm:$0xff] %v147
                %v149 = vld [vmem:[%s143 + $0x20] sm:$0xff]
                %150 = vst [vmem:[%s144 + $0x10] sm:$0xff] %v149
                %v151 = vld [vmem:[%s143 + $0x30] sm:$0xff]
                %152 = vst [vmem:[%s144 + $0x18] sm:$0xff] %v151
                %v153 = vld [vmem:[%s143 + $0x40] sm:$0xff]
                %154 = vst [vmem:[%s144 + $0x20] sm:$0xff] %v153
                %v155 = vld [vmem:[%s143 + $0x50] sm:$0xff]
                %156 = vst [vmem:[%s144 + $0x28] sm:$0xff] %v155
                %v157 = vld [vmem:[%s143 + $0x60] sm:$0xff]
                %158 = vst [vmem:[%s144 + $0x30] sm:$0xff] %v157
                %v159 = vld [vmem:[%s143 + $0x70] sm:$0xff]
                %160 = vst [vmem:[%s144 + $0x38] sm:$0xff] %v159
                %v161 = vld [vmem:[%s143 + $0x80] sm:$0xff]
                %162 = vst [vmem:[%s144 + $0x40] sm:$0xff] %v161
                %v163 = vld [vmem:[%s143 + $0x90] sm:$0xff]
                %164 = vst [vmem:[%s144 + $0x48] sm:$0xff] %v163
                %v165 = vld [vmem:[%s143 + $0xa0] sm:$0xff]
                %166 = vst [vmem:[%s144 + $0x50] sm:$0xff] %v165
                %v167 = vld [vmem:[%s143 + $0xb0] sm:$0xff]
                %168 = vst [vmem:[%s144 + $0x58] sm:$0xff] %v167
                %v169 = vld [vmem:[%s143 + $0xc0] sm:$0xff]
                %170 = vst [vmem:[%s144 + $0x60] sm:$0xff] %v169
                %v171 = vld [vmem:[%s143 + $0xd0] sm:$0xff]
                %172 = vst [vmem:[%s144 + $0x68] sm:$0xff] %v171
                %v173 = vld [vmem:[%s143 + $0xe0] sm:$0xff]
                %174 = vst [vmem:[%s144 + $0x70] sm:$0xff] %v173
                %v175 = vld [vmem:[%s143 + $0xf0] sm:$0xff]
                %176 = vst [vmem:[%s144 + $0x78] sm:$0xff] %v175
                %v177 = vld [vmem:[%s143 + $0x100] sm:$0xff]
                %178 = vst [vmem:[%s144 + $0x80] sm:$0xff] %v177
                %v179 = vld [vmem:[%s143 + $0x110] sm:$0xff]
                %180 = vst [vmem:[%s144 + $0x88] sm:$0xff] %v179
                %v181 = vld [vmem:[%s143 + $0x120] sm:$0xff]
                %182 = vst [vmem:[%s144 + $0x90] sm:$0xff] %v181
                %v183 = vld [vmem:[%s143 + $0x130] sm:$0xff]
                %184 = vst [vmem:[%s144 + $0x98] sm:$0xff] %v183
                %v185 = vld [vmem:[%s143 + $0x140] sm:$0xff]
                %186 = vst [vmem:[%s144 + $0xa0] sm:$0xff] %v185
                %v187 = vld [vmem:[%s143 + $0x150] sm:$0xff]
                %188 = vst [vmem:[%s144 + $0xa8] sm:$0xff] %v187
                %v189 = vld [vmem:[%s143 + $0x160] sm:$0xff]
                %190 = vst [vmem:[%s144 + $0xb0] sm:$0xff] %v189
                %v191 = vld [vmem:[%s143 + $0x170] sm:$0xff]
                %192 = vst [vmem:[%s144 + $0xb8] sm:$0xff] %v191
                %v193 = vld [vmem:[%s143 + $0x180] sm:$0xff]
                %194 = vst [vmem:[%s144 + $0xc0] sm:$0xff] %v193
                %v195 = vld [vmem:[%s143 + $0x190] sm:$0xff]
                %196 = vst [vmem:[%s144 + $0xc8] sm:$0xff] %v195
                %v197 = vld [vmem:[%s143 + $0x1a0] sm:$0xff]
                %198 = vst [vmem:[%s144 + $0xd0] sm:$0xff] %v197
                %v199 = vld [vmem:[%s143 + $0x1b0] sm:$0xff]
                %200 = vst [vmem:[%s144 + $0xd8] sm:$0xff] %v199
                %v201 = vld [vmem:[%s143 + $0x1c0] sm:$0xff]
                %202 = vst [vmem:[%s144 + $0xe0] sm:$0xff] %v201
                %v203 = vld [vmem:[%s143 + $0x1d0] sm:$0xff]
                %204 = vst [vmem:[%s144 + $0xe8] sm:$0xff] %v203
                %v205 = vld [vmem:[%s143 + $0x1e0] sm:$0xff]
                %206 = vst [vmem:[%s144 + $0xf0] sm:$0xff] %v205
                %v207 = vld [vmem:[%s143 + $0x1f0] sm:$0xff]
                %208 = vst [vmem:[%s144 + $0xf8] sm:$0xff] %v207
                %v209 = vld [vmem:[%s143 + $0x200] sm:$0xff]
                %210 = vst [vmem:[%s144 + $0x100] sm:$0xff] %v209
                %v211 = vld [vmem:[%s143 + $0x210] sm:$0xff]
                %212 = vst [vmem:[%s144 + $0x108] sm:$0xff] %v211
                %v213 = vld [vmem:[%s143 + $0x220] sm:$0xff]
                %214 = vst [vmem:[%s144 + $0x110] sm:$0xff] %v213
                %v215 = vld [vmem:[%s143 + $0x230] sm:$0xff]
                %216 = vst [vmem:[%s144 + $0x118] sm:$0xff] %v215
                %v217 = vld [vmem:[%s143 + $0x240] sm:$0xff]
                %218 = vst [vmem:[%s144 + $0x120] sm:$0xff] %v217
                %v219 = vld [vmem:[%s143 + $0x250] sm:$0xff]
                %220 = vst [vmem:[%s144 + $0x128] sm:$0xff] %v219
                %v221 = vld [vmem:[%s143 + $0x260] sm:$0xff]
                %222 = vst [vmem:[%s144 + $0x130] sm:$0xff] %v221
                %v223 = vld [vmem:[%s143 + $0x270] sm:$0xff]
                %224 = vst [vmem:[%s144 + $0x138] sm:$0xff] %v223
                %v225 = vld [vmem:[%s143 + $0x280] sm:$0xff]
                %226 = vst [vmem:[%s144 + $0x140] sm:$0xff] %v225
              $region41: #{mixed_conv2d.1} parent=35 // loop_footer
                %s142 = sadd.s32 1, %s138
              $region42: #{mixed_conv2d.1} parent=35 // loop_footer_branch
                %137 = sbr.rel target = $region38
              $region43: #{mixed_conv2d.1} parent=35 // loop_exit
                _
            $region36: #{mixed_conv2d.1} parent=27 // pred_fallthru
              _
          $region28: #{mixed_conv2d.1} parent=23 // pred_fallthru
            _
          %321 = vnop
        $region24: #{mixed_conv2d.1} parent=19 // pred_fallthru
          _
      $region20: #{mixed_conv2d.1} parent=5 // pred_fallthru
        _
      %p322 = scmp.le.s32.totalorder 1, %s8
      %p323 = scmp.lt.s32.totalorder %s8, 5
      %p324 = pnand %p322, %p323
      %p325 = pneg %p324
      // Predicated region
      $region59: #{mixed_conv2d.1} parent=5 // pred_check
        _
      $region60: #{mixed_conv2d.1} parent=5 // pred_check_branch
        %327 = sbr.rel (%p324) target = $region62
      $region61: #{mixed_conv2d.1} parent=5 // pred_region
        %s328 = ssub.s32 %s8, 1
        %s329 = sand.u32 %s56, 1
        %s330 = sand.u32 %s56, 1
        %s331 = smul.addr %s330, 328
        %s332 = scalar_lea.vmem [#allocation2], %s331
        // Predicated region
        $region63: #{mixed_conv2d.1} parent=61 // pred_check
          %p333 = pneg %p69
        $region64: #{mixed_conv2d.1} parent=61 // pred_check_branch
          %335 = sbr.rel (%p333) target = $region66
        $region65: #{mixed_conv2d.1} parent=61 // pred_region
          _
        $region66: #{mixed_conv2d.1} parent=61 // pred_fallthru
          _
        %p336 = pneg %p41
        %p337 = pneg %p38
        %s338 = sand.u32 %s56, 1
        %s339 = sand.u32 %s56, 1
        %s340 = smul.addr %s339, 328
        %s341 = scalar_lea.vmem [#allocation2], %s340
        %p342 = pneg %p69
        %p343 = pneg %p66
        %p344 = pneg %p97
        %p345 = pneg %p94
        %p346 = scmp.lt.s32.totalorder %s17, 1
        %s347 = scalar_select %p346, %s17, 1
        %p348 = scmp.lt.s32.totalorder %s18, 1
        %s349 = scalar_select %p348, %s18, 1
        %s350 = smul.addr %s347, 2
        %s351 = sadd.s32 %s349, %s350
        %s352 = smul.addr %s351, 8
        %s353 = scalar_lea.vmem %s2, %s352
        %p354 = scmp.lt.s32.totalorder %s17, 1
        %s355 = scalar_select %p354, %s17, 1
        %p356 = scmp.lt.s32.totalorder %s18, 1
        %s357 = scalar_select %p356, %s18, 1
        %s358 = smul.addr %s355, 2
        %s359 = sadd.s32 %s357, %s358
        %s360 = smul.addr %s359, 8
        %s361 = scalar_lea.vmem %s2, %s360
        %v362 = vld [vmem:[%s0] sm:$0xff]
        %v363 = vld [vmem:[%s0 + $0x8] sm:$0xff]
        %v364 = vld [vmem:[%s0 + $0x10] sm:$0xff]
        %v365 = vld [vmem:[%s332] sm:$0xff]
        %v366 = vld [vmem:[%s332 + $0x8] sm:$0xff]
        %v367 = vld [vmem:[%s332 + $0x10] sm:$0xff]
        %v368 = vld [vmem:[%s332 + $0x18] sm:$0xff]
        %v369 = vld [vmem:[%s332 + $0x20] sm:$0xff]
        %v370 = vld [vmem:[%s332 + $0x28] sm:$0xff]
        %v371 = vld [vmem:[%s332 + $0x30] sm:$0xff]
        %v372 = vld [vmem:[%s332 + $0x38] sm:$0xff]
        %v373 = vld [vmem:[%s332 + $0x40] sm:$0xff]
        %v374 = vld [vmem:[%s332 + $0x48] sm:$0xff]
        %v375 = vld [vmem:[%s332 + $0x50] sm:$0xff]
        %v376 = vld [vmem:[%s332 + $0x58] sm:$0xff]
        %v377 = vld [vmem:[%s332 + $0x60] sm:$0xff]
        %v378 = vld [vmem:[%s332 + $0x68] sm:$0xff]
        %v379 = vld [vmem:[%s332 + $0x70] sm:$0xff]
        %v380 = vld [vmem:[%s332 + $0x78] sm:$0xff]
        %v381 = vld [vmem:[%s332 + $0x80] sm:$0xff]
        %v382 = vld [vmem:[%s332 + $0x88] sm:$0xff]
        %v383 = vld [vmem:[%s332 + $0x90] sm:$0xff]
        %v384 = vld [vmem:[%s332 + $0x98] sm:$0xff]
        %v385 = vld [vmem:[%s332 + $0xa0] sm:$0xff]
        %v386 = vld [vmem:[%s332 + $0xa8] sm:$0xff]
        %v387 = vld [vmem:[%s332 + $0xb0] sm:$0xff]
        %v388 = vld [vmem:[%s332 + $0xb8] sm:$0xff]
        %v389 = vld [vmem:[%s332 + $0xc0] sm:$0xff]
        %v390 = vld [vmem:[%s332 + $0xc8] sm:$0xff]
        %v391 = vld [vmem:[%s332 + $0xd0] sm:$0xff]
        %v392 = vld [vmem:[%s332 + $0xd8] sm:$0xff]
        %v393 = vld [vmem:[%s332 + $0xe0] sm:$0xff]
        %v394 = vld [vmem:[%s332 + $0xe8] sm:$0xff]
        %v395 = vld [vmem:[%s332 + $0xf0] sm:$0xff]
        %v396 = vld [vmem:[%s332 + $0xf8] sm:$0xff]
        %v397 = vld [vmem:[%s332 + $0x100] sm:$0xff]
        %v398 = vld [vmem:[%s332 + $0x108] sm:$0xff]
        %v399 = vld [vmem:[%s332 + $0x110] sm:$0xff]
        %v400 = vld [vmem:[%s332 + $0x118] sm:$0xff]
        %v401 = vld [vmem:[%s332 + $0x120] sm:$0xff]
        %v402 = vld [vmem:[%s332 + $0x128] sm:$0xff]
        %v403 = vld [vmem:[%s332 + $0x130] sm:$0xff]
        %v404 = vld [vmem:[%s332 + $0x138] sm:$0xff]
        %v405 = vld [vmem:[%s332 + $0x140] sm:$0xf]
        %vm406 = vcmask 556032
        %v408 = vsel %vm406, %v364, 0
        %vm410 = vcmask 1043456
        %v412 = vsel %vm410, %v405, 0
        %414 = vmatprep.subr.mxu0 0.0
        %415 = vmatpush1.msra.mxu0 %v365
        %416 = vmatprep.subr.mxu0 0.0
        %417 = vmatpush1.msra.mxu0 %v366
        %418 = vmatprep.subr.mxu0 0.0
        %419 = vmatpush1.msra.mxu0 %v367
        %420 = vmatprep.subr.mxu0 0.0
        %421 = vmatpush1.msra.mxu0 %v368
        %422 = vmatprep.subr.mxu0 0.0
        %423 = vmatpush1.msra.mxu0 %v369
        %424 = vmatprep.subr.mxu0 0.0
        %425 = vmatpush1.msra.mxu0 %v370
        %426 = vmatprep.subr.mxu0 0.0
        %427 = vmatpush1.msra.mxu0 %v371
        %428 = vmatprep.subr.mxu0 0.0
        %429 = vmatpush1.msra.mxu0 %v372
        %430 = vmatprep.subr.mxu0 0.0
        %431 = vmatpush1.msra.mxu0 %v373
        %432 = vmatprep.subr.mxu0 0.0
        %433 = vmatpush1.msra.mxu0 %v374
        %434 = vmatprep.subr.mxu0 0.0
        %435 = vmatpush1.msra.mxu0 %v375
        %436 = vmatprep.subr.mxu0 0.0
        %437 = vmatpush1.msra.mxu0 %v376
        %438 = vmatprep.subr.mxu0 0.0
        %439 = vmatpush1.msra.mxu0 %v377
        %440 = vmatprep.subr.mxu0 0.0
        %441 = vmatpush1.msra.mxu0 %v378
        %442 = vmatprep.subr.mxu0 0.0
        %443 = vmatpush1.msra.mxu0 %v379
        %444 = vmatprep.subr.mxu0 0.0
        %445 = vmatpush1.msra.mxu0 %v380
        %446 = vmatprep.subr.mxu0 0.0
        %447 = vmatpush1.msra.mxu0 %v381
        %448 = vmatprep.subr.mxu0 0.0
        %449 = vmatpush1.msra.mxu0 %v382
        %450 = vmatprep.subr.mxu0 0.0
        %451 = vmatpush1.msra.mxu0 %v383
        %452 = vmatprep.subr.mxu0 0.0
        %453 = vmatpush1.msra.mxu0 %v384
        %454 = vmatprep.subr.mxu0 0.0
        %455 = vmatpush1.msra.mxu0 %v385
        %456 = vmatprep.subr.mxu0 0.0
        %457 = vmatpush1.msra.mxu0 %v386
        %458 = vmatprep.subr.mxu0 0.0
        %459 = vmatpush1.msra.mxu0 %v387
        %460 = vmatprep.subr.mxu0 0.0
        %461 = vmatpush1.msra.mxu0 %v388
        %462 = vmatprep.subr.mxu0 0.0
        %463 = vmatpush1.msra.mxu0 %v389
        %464 = vmatprep.subr.mxu0 0.0
        %465 = vmatpush1.msra.mxu0 %v390
        %466 = vmatprep.subr.mxu0 0.0
        %467 = vmatpush1.msra.mxu0 %v391
        %468 = vmatprep.subr.mxu0 0.0
        %469 = vmatpush1.msra.mxu0 %v392
        %470 = vmatprep.subr.mxu0 0.0
        %471 = vmatpush1.msra.mxu0 %v393
        %472 = vmatprep.subr.mxu0 0.0
        %473 = vmatpush1.msra.mxu0 %v394
        %474 = vmatprep.subr.mxu0 0.0
        %475 = vmatpush1.msra.mxu0 %v395
        %476 = vmatprep.subr.mxu0 0.0
        %477 = vmatpush1.msra.mxu0 %v396
        %478 = vmatprep.mubr.f32.mxu0 %v363
        %479 = vmatmul.mubr.f32.gmra.mrb[0].mxu0 %v362
        %v480 = vpop.f32.mrb[0].mxu0
        %v481 = vadd.f32 0.0, %v480
        %v482 = vpop.f32.mrb[0].mxu0
        %483 = vdwg.mxu0
        %484 = vmatprep.subr.mxu0 0.0
        %485 = vmatpush1.msra.mxu0 %v397
        %486 = vmatprep.subr.mxu0 0.0
        %487 = vmatpush1.msra.mxu0 %v398
        %488 = vmatprep.subr.mxu0 0.0
        %489 = vmatpush1.msra.mxu0 %v399
        %490 = vmatprep.subr.mxu0 0.0
        %491 = vmatpush1.msra.mxu0 %v400
        %492 = vmatprep.subr.mxu0 0.0
        %493 = vmatpush1.msra.mxu0 %v401
        %494 = vmatprep.subr.mxu0 0.0
        %495 = vmatpush1.msra.mxu0 %v402
        %496 = vmatprep.subr.mxu0 0.0
        %497 = vmatpush1.msra.mxu0 %v403
        %498 = vmatprep.subr.mxu0 0.0
        %499 = vmatpush1.msra.mxu0 %v404
        %500 = vmatprep.subr.mxu0 0.0
        %501 = vmatpush1.msra.mxu0 %v412
        %502 = vmatprep.subr.mxu0 0.0
        %503 = vmatpush1.msra.mxu0 0.0
        %504 = vmatprep.subr.mxu0 0.0
        %505 = vmatpush1.msra.mxu0 0.0
        %506 = vmatprep.subr.mxu0 0.0
        %507 = vmatpush1.msra.mxu0 0.0
        %508 = vmatprep.subr.mxu0 0.0
        %509 = vmatpush1.msra.mxu0 0.0
        %510 = vmatprep.subr.mxu0 0.0
        %511 = vmatpush1.msra.mxu0 0.0
        %512 = vmatprep.subr.mxu0 0.0
        %513 = vmatpush1.msra.mxu0 0.0
        %514 = vmatprep.subr.mxu0 0.0
        %515 = vmatpush1.msra.mxu0 0.0
        %516 = vmatprep.subr.mxu0 0.0
        %517 = vmatpush1.msra.mxu0 0.0
        %518 = vmatprep.subr.mxu0 0.0
        %519 = vmatpush1.msra.mxu0 0.0
        %520 = vmatprep.subr.mxu0 0.0
        %521 = vmatpush1.msra.mxu0 0.0
        %522 = vmatprep.subr.mxu0 0.0
        %523 = vmatpush1.msra.mxu0 0.0
        %524 = vmatprep.subr.mxu0 0.0
        %525 = vmatpush1.msra.mxu0 0.0
        %526 = vmatprep.subr.mxu0 0.0
        %527 = vmatpush1.msra.mxu0 0.0
        %528 = vmatprep.subr.mxu0 0.0
        %529 = vmatpush1.msra.mxu0 0.0
        %530 = vmatprep.subr.mxu0 0.0
        %531 = vmatpush1.msra.mxu0 0.0
        %532 = vmatprep.subr.mxu0 0.0
        %533 = vmatpush1.msra.mxu0 0.0
        %534 = vmatprep.subr.mxu0 0.0
        %535 = vmatpush1.msra.mxu0 0.0
        %536 = vmatprep.subr.mxu0 0.0
        %537 = vmatpush1.msra.mxu0 0.0
        %538 = vmatprep.subr.mxu0 0.0
        %539 = vmatpush1.msra.mxu0 0.0
        %540 = vmatprep.subr.mxu0 0.0
        %541 = vmatpush1.msra.mxu0 0.0
        %542 = vmatprep.subr.mxu0 0.0
        %543 = vmatpush1.msra.mxu0 0.0
        %544 = vmatprep.subr.mxu0 0.0
        %545 = vmatpush1.msra.mxu0 0.0
        %546 = vmatprep.subr.mxu0 0.0
        %547 = vmatpush1.msra.mxu0 0.0
        %548 = vmatprep.mubr.f32.mxu0 0.0
        %549 = vmatmul.mubr.f32.gmra.mrb[0].mxu0 %v408
        %v550 = vpop.f32.mrb[0].mxu0
        %v551 = vadd.f32 %v481, %v550
        %v552 = vpop.f32.mrb[0].mxu0
        %553 = vdwg.mxu0
        %554 = vst [vmem:[%s361] sm:$0xff] %v551
        %p555 = scmp.lt.s32.totalorder %s17, 1
        %s556 = scalar_select %p555, %s17, 1
        %p557 = scmp.lt.s32.totalorder %s18, 1
        %s558 = scalar_select %p557, %s18, 1
        %s559 = smul.addr %s556, 2
        %s560 = sadd.s32 %s558, %s559
        %s561 = smul.addr %s560, 8
        %s562 = scalar_lea.vmem %s2, %s561
        // Predicated region
        $region67: #{mixed_conv2d.1} parent=61 // pred_check
          %p563 = pneg %p94
        $region68: #{mixed_conv2d.1} parent=61 // pred_check_branch
          %565 = sbr.rel (%p563) target = $region70
        $region69: #{mixed_conv2d.1} parent=61 // pred_region
          _
        $region70: #{mixed_conv2d.1} parent=61 // pred_fallthru
          _
      $region62: #{mixed_conv2d.1} parent=5 // pred_fallthru
        _
      %p566 = scmp.le.s32.totalorder 2, %s8
      // Predicated region
      $region71: #{mixed_conv2d.1} parent=5 // pred_check
        %p567 = pneg %p566
      $region72: #{mixed_conv2d.1} parent=5 // pred_check_branch
        %569 = sbr.rel (%p567) target = $region74
      $region73: #{mixed_conv2d.1} parent=5 // pred_region
        %s570 = ssub.s32 %s8, 2
        // Predicated region
        $region75: #{mixed_conv2d.1} parent=73 // pred_check
          %p571 = pneg %p100
        $region76: #{mixed_conv2d.1} parent=73 // pred_check_branch
          %573 = sbr.rel (%p571) target = $region78
        $region77: #{mixed_conv2d.1} parent=73 // pred_region
          %p574 = scmp.lt.s32.totalorder %s19, 1
          %s575 = scalar_select %p574, %s19, 1
          %p576 = scmp.lt.s32.totalorder %s20, 1
          %s577 = scalar_select %p576, %s20, 1
          %s578 = smul.addr %s575, 2
          %s579 = sadd.s32 %s577, %s578
          %s580 = smul.addr %s579, 8
          %s581 = scalar_lea.vmem %s2, %s580
        $region78: #{mixed_conv2d.1} parent=73 // pred_fallthru
          _
      $region74: #{mixed_conv2d.1} parent=5 // pred_fallthru
        _
    $region6: #{mixed_conv2d.1} parent=1 // loop_footer
      %s12 = sadd.s32 1, %s8
    $region7: #{mixed_conv2d.1} parent=1 // loop_footer_branch
      %7 = sbr.rel target = $region3
    $region8: #{mixed_conv2d.1} parent=1 // loop_exit
      _

</llo_original>
